<compile_context>
chip_gen: v5e
topology: v5e:2x2
jax: 0.10.0
libtpu: 0.0.40
codegen_flags: <defaults>
</compile_context>

<pallas_src>
import functools

import jax
import jax.numpy as jnp
from jax.experimental import pallas as pl
from jax.experimental.pallas import tpu as pltpu


def _attention_kernel(x_ref, wq_ref, bq_ref, wk_ref, bk_ref, wv_ref, bv_ref,
                      wproj_ref, bproj_ref, o_ref,
                      *, n_heads, head_dim, scale, tq):
    # Per grid step:
    #   x_ref:     (1, N, D)   full sample (K/V need every token)
    #   w*_ref:    (D, D)      pre-transposed to (in, out)
    #   b*_ref:    (1, D)
    #   o_ref:     (1, TQ, D)  this query tile's output
    qt = pl.program_id(1)
    x = x_ref[0]                                   # (N, D), input dtype
    N = x.shape[0]
    D = n_heads * head_dim
    in_dtype = x.dtype

    # ---- K / V projections for the whole sample (input-dtype operands, f32 acc) ----
    k = jnp.dot(x, wk_ref[...], preferred_element_type=jnp.float32) + bk_ref[...]
    v = jnp.dot(x, wv_ref[...], preferred_element_type=jnp.float32) + bv_ref[...]

    # ---- Q projection for this query tile only; fold the softmax scale into q ----
    q_start = pl.multiple_of(qt * tq, tq)
    x_q = x_ref[0, pl.ds(q_start, tq), :]          # (TQ, D)
    q = jnp.dot(x_q, wq_ref[...], preferred_element_type=jnp.float32) + bq_ref[...]
    q = q * scale

    # ---- heads on a leading (batch) axis: (H, tokens, hd) ----
    qh = jnp.transpose(q.reshape(tq, n_heads, head_dim), (1, 0, 2)).astype(in_dtype)
    kh = jnp.transpose(k.reshape(N, n_heads, head_dim), (1, 0, 2)).astype(in_dtype)
    vh = jnp.transpose(v.reshape(N, n_heads, head_dim), (1, 0, 2)).astype(in_dtype)

    # ---- scaled dot-product attention, all heads batched (no explicit k.T copy) ----
    s = jnp.einsum('hqd,hkd->hqk', qh, kh,
                   preferred_element_type=jnp.float32)           # (H, TQ, N) f32
    m = jnp.max(s, axis=-1, keepdims=True)
    p = jnp.exp(s - m)
    denom = jnp.sum(p, axis=-1, keepdims=True)                   # (H, TQ, 1)
    # attn_drop: p = 0.0 -> identity.
    ctx = jnp.einsum('hqk,hkd->hqd', p.astype(in_dtype), vh,
                     preferred_element_type=jnp.float32)         # (H, TQ, hd)
    # Deferred softmax normalization: rescale the small context instead of
    # dividing the (H, TQ, N) probability matrix.
    ctx = ctx * pl.reciprocal(denom, approx=False)

    # transpose(1,2).flatten(2): heads back onto the feature axis -> (TQ, D)
    wa = jnp.transpose(ctx, (1, 0, 2)).reshape(tq, D).astype(in_dtype)

    # ---- output projection ----
    y = jnp.dot(wa, wproj_ref[...], preferred_element_type=jnp.float32) + bproj_ref[...]
    # proj_drop: p = 0.0 -> identity.
    o_ref[0] = y.astype(o_ref.dtype)


def attention_pallas(x, w_qkv, b_qkv, w_proj, b_proj, *, n_heads):
    """x: (B, N, D).  w_qkv: (3D, D) [PyTorch layout], b_qkv: (3D,),
       w_proj: (D, D) [PyTorch layout], b_proj: (D,)."""
    B, N, D = x.shape
    assert D % n_heads == 0
    head_dim = D // n_heads
    scale = head_dim ** (-0.5)

    # Split the fused qkv weight into per-projection weights, pre-transposed to
    # (in, out) so the kernel computes x @ W + b on the MXU. Head h occupies
    # columns [h*hd:(h+1)*hd] of each, matching the reshape/permute semantics.
    wq_t = w_qkv[0 * D:1 * D].T
    wk_t = w_qkv[1 * D:2 * D].T
    wv_t = w_qkv[2 * D:3 * D].T
    bq = b_qkv[0 * D:1 * D].reshape(1, D)
    bk = b_qkv[1 * D:2 * D].reshape(1, D)
    bv = b_qkv[2 * D:3 * D].reshape(1, D)
    wproj_t = w_proj.T
    bproj = b_proj.reshape(1, D)

    # Query-tile size: a multiple of 8 that divides N when possible, else full N
    # (a full-extent block always satisfies the (8,128) constraint).
    tq = N
    for cand in (256, 128, 64, 32, 16, 8):
        if N % cand == 0:
            tq = cand
            break
    n_q_tiles = N // tq

    kernel = functools.partial(_attention_kernel, n_heads=n_heads,
                               head_dim=head_dim, scale=scale, tq=tq)

    def weight_spec(shape):
        return pl.BlockSpec(shape, lambda b, qt: (0, 0))

    return pl.pallas_call(
        kernel,
        out_shape=jax.ShapeDtypeStruct((B, N, D), x.dtype),
        grid_spec=pltpu.PrefetchScalarGridSpec(
            num_scalar_prefetch=0,
            grid=(B, n_q_tiles),
            in_specs=[
                pl.BlockSpec((1, N, D), lambda b, qt: (b, 0, 0)),   # x (full sample)
                weight_spec((D, D)), weight_spec((1, D)),           # Wq, bq
                weight_spec((D, D)), weight_spec((1, D)),           # Wk, bk
                weight_spec((D, D)), weight_spec((1, D)),           # Wv, bv
                weight_spec((D, D)), weight_spec((1, D)),           # Wproj, bproj
            ],
            out_specs=pl.BlockSpec((1, tq, D), lambda b, qt: (b, qt, 0)),
        ),
        compiler_params=pltpu.CompilerParams(
            dimension_semantics=("parallel", "parallel")),
    )(x, wq_t, bq, wk_t, bk, wv_t, bv, wproj_t, bproj)


def attention_ref(x, w_qkv, b_qkv, w_proj, b_proj, *, n_heads):
    """Pure-JAX reference mirroring the PyTorch forward, for verification."""
    B, N, D = x.shape
    hd = D // n_heads
    scale = hd ** (-0.5)
    qkv = x @ w_qkv.T + b_qkv                              # (B, N, 3D)
    qkv = qkv.reshape(B, N, 3, n_heads, hd)
    qkv = jnp.transpose(qkv, (2, 0, 3, 1, 4))              # (3, B, H, N, hd)
    q, k, v = qkv[0], qkv[1], qkv[2]
    dp = jnp.einsum('bhqd,bhkd->bhqk', q, k) * scale
    attn = jax.nn.softmax(dp, axis=-1)
    wa = jnp.einsum('bhqk,bhkd->bhqd', attn, v)            # (B, H, N, hd)
    wa = jnp.transpose(wa, (0, 2, 1, 3)).reshape(B, N, D)
    return wa @ w_proj.T + b_proj


if __name__ == "__main__":
    B, N, D, H = 2, 8, 32, 4          # batch, tokens, dim, heads (head_dim = 8)
    key = jax.random.PRNGKey(0)
    kx, k1, k2, k3, k4 = jax.random.split(key, 5)

    x = jax.random.normal(kx, (B, N, D), dtype=jnp.float32)
    # Deterministic synthetic parameters (PyTorch nn.Linear shapes: (out, in)).
    w_qkv = 0.05 * jax.random.normal(k1, (3 * D, D), dtype=jnp.float32)
    b_qkv = 0.05 * jax.random.normal(k2, (3 * D,), dtype=jnp.float32)
    w_proj = 0.05 * jax.random.normal(k3, (D, D), dtype=jnp.float32)
    b_proj = 0.05 * jax.random.normal(k4, (D,), dtype=jnp.float32)

    out = attention_pallas(x, w_qkv, b_qkv, w_proj, b_proj, n_heads=H)
    out = jax.block_until_ready(out)

    ref = attention_ref(x, w_qkv, b_qkv, w_proj, b_proj, n_heads=H)
    assert out.shape == (B, N, D)
    assert jnp.allclose(out, ref, atol=1e-4, rtol=1e-4), "mismatch vs reference"

    print("KERNEL_OK")
</pallas_src>

<mosaic_0001>
module attributes {stable_mosaic.version = 11 : i64} {
  func.func @_attention_kernel(%arg0: i32, %arg1: i32, %arg2: memref<1x8x32xf32, #tpu.memory_space<vmem>>, %arg3: memref<32x32xf32, #tpu.memory_space<vmem>>, %arg4: memref<1x32xf32, #tpu.memory_space<vmem>>, %arg5: memref<32x32xf32, #tpu.memory_space<vmem>>, %arg6: memref<1x32xf32, #tpu.memory_space<vmem>>, %arg7: memref<32x32xf32, #tpu.memory_space<vmem>>, %arg8: memref<1x32xf32, #tpu.memory_space<vmem>>, %arg9: memref<32x32xf32, #tpu.memory_space<vmem>>, %arg10: memref<1x32xf32, #tpu.memory_space<vmem>>, %arg11: memref<1x8x32xf32, #tpu.memory_space<vmem>>) attributes {dimension_semantics = [#tpu.dimension_semantics<parallel>, #tpu.dimension_semantics<parallel>], iteration_bounds = array<i64: 2, 1>, scalar_prefetch = 0 : i64, scratch_operands = 0 : i64, tpu.core_type = #tpu.core_type<tc>, window_params = [{transform_indices = @transform_0, window_bounds = array<i64: 1, 8, 32>}, {pipeline_mode = #tpu.pipeline_mode<synchronous>, transform_indices = @transform_1, window_bounds = array<i64: 32, 32>}, {pipeline_mode = #tpu.pipeline_mode<synchronous>, transform_indices = @transform_2, window_bounds = array<i64: 1, 32>}, {pipeline_mode = #tpu.pipeline_mode<synchronous>, transform_indices = @transform_3, window_bounds = array<i64: 32, 32>}, {pipeline_mode = #tpu.pipeline_mode<synchronous>, transform_indices = @transform_4, window_bounds = array<i64: 1, 32>}, {pipeline_mode = #tpu.pipeline_mode<synchronous>, transform_indices = @transform_5, window_bounds = array<i64: 32, 32>}, {pipeline_mode = #tpu.pipeline_mode<synchronous>, transform_indices = @transform_6, window_bounds = array<i64: 1, 32>}, {pipeline_mode = #tpu.pipeline_mode<synchronous>, transform_indices = @transform_7, window_bounds = array<i64: 32, 32>}, {pipeline_mode = #tpu.pipeline_mode<synchronous>, transform_indices = @transform_8, window_bounds = array<i64: 1, 32>}, {transform_indices = @transform_9, window_bounds = array<i64: 1, 8, 32>}]} {
    %c0 = arith.constant 0 : index
    %c0_0 = arith.constant 0 : index
    %c0_1 = arith.constant 0 : index
    %0 = vector.load %arg2[%c0, %c0_0, %c0_1] : memref<1x8x32xf32, #tpu.memory_space<vmem>>, vector<1x8x32xf32>
    %1 = vector.shape_cast %0 : vector<1x8x32xf32> to vector<8x32xf32>
    %c0_2 = arith.constant 0 : index
    %c0_3 = arith.constant 0 : index
    %2 = vector.load %arg5[%c0_2, %c0_3] : memref<32x32xf32, #tpu.memory_space<vmem>>, vector<32x32xf32>
    %cst = arith.constant dense<0.000000e+00> : vector<8x32xf32>
    %3 = tpu.matmul %1, %2, %cst {dimension_numbers = #tpu.dot_dimension_numbers<[1], [0], [0], [1], [0, 0, 1, 1], [], []>} : vector<8x32xf32>, vector<32x32xf32>, vector<8x32xf32> -> vector<8x32xf32>
    %c0_4 = arith.constant 0 : index
    %c0_5 = arith.constant 0 : index
    %4 = vector.load %arg6[%c0_4, %c0_5] : memref<1x32xf32, #tpu.memory_space<vmem>>, vector<1x32xf32>
    %5 = vector.broadcast %4 : vector<1x32xf32> to vector<8x32xf32>
    %6 = arith.addf %3, %5 : vector<8x32xf32>
    %c0_6 = arith.constant 0 : index
    %c0_7 = arith.constant 0 : index
    %7 = vector.load %arg7[%c0_6, %c0_7] : memref<32x32xf32, #tpu.memory_space<vmem>>, vector<32x32xf32>
    %cst_8 = arith.constant dense<0.000000e+00> : vector<8x32xf32>
    %8 = tpu.matmul %1, %7, %cst_8 {dimension_numbers = #tpu.dot_dimension_numbers<[1], [0], [0], [1], [0, 0, 1, 1], [], []>} : vector<8x32xf32>, vector<32x32xf32>, vector<8x32xf32> -> vector<8x32xf32>
    %c0_9 = arith.constant 0 : index
    %c0_10 = arith.constant 0 : index
    %9 = vector.load %arg8[%c0_9, %c0_10] : memref<1x32xf32, #tpu.memory_space<vmem>>, vector<1x32xf32>
    %10 = vector.broadcast %9 : vector<1x32xf32> to vector<8x32xf32>
    %11 = arith.addf %8, %10 : vector<8x32xf32>
    %c8_i32 = arith.constant 8 : i32
    %12 = arith.muli %arg1, %c8_i32 : i32
    %13 = tpu.assume_multiple %12, 8 : i32
    %c0_11 = arith.constant 0 : index
    %14 = arith.index_cast %13 : i32 to index
    %c0_12 = arith.constant 0 : index
    %15 = vector.load %arg2[%c0_11, %14, %c0_12] : memref<1x8x32xf32, #tpu.memory_space<vmem>>, vector<1x8x32xf32>
    %16 = vector.shape_cast %15 : vector<1x8x32xf32> to vector<8x32xf32>
    %c0_13 = arith.constant 0 : index
    %c0_14 = arith.constant 0 : index
    %17 = vector.load %arg3[%c0_13, %c0_14] : memref<32x32xf32, #tpu.memory_space<vmem>>, vector<32x32xf32>
    %cst_15 = arith.constant dense<0.000000e+00> : vector<8x32xf32>
    %18 = tpu.matmul %16, %17, %cst_15 {dimension_numbers = #tpu.dot_dimension_numbers<[1], [0], [0], [1], [0, 0, 1, 1], [], []>} : vector<8x32xf32>, vector<32x32xf32>, vector<8x32xf32> -> vector<8x32xf32>
    %c0_16 = arith.constant 0 : index
    %c0_17 = arith.constant 0 : index
    %19 = vector.load %arg4[%c0_16, %c0_17] : memref<1x32xf32, #tpu.memory_space<vmem>>, vector<1x32xf32>
    %20 = vector.broadcast %19 : vector<1x32xf32> to vector<8x32xf32>
    %21 = arith.addf %18, %20 : vector<8x32xf32>
    %cst_18 = arith.constant 0.353553385 : f32
    %22 = vector.broadcast %cst_18 : f32 to vector<8x32xf32>
    %23 = arith.mulf %21, %22 : vector<8x32xf32>
    %24 = vector.shape_cast %23 : vector<8x32xf32> to vector<8x4x8xf32>
    %25 = tpu.transpose %24, [1, 0, 2] : vector<8x4x8xf32> -> vector<4x8x8xf32>
    %26 = vector.shape_cast %6 : vector<8x32xf32> to vector<8x4x8xf32>
    %27 = tpu.transpose %26, [1, 0, 2] : vector<8x4x8xf32> -> vector<4x8x8xf32>
    %28 = vector.shape_cast %11 : vector<8x32xf32> to vector<8x4x8xf32>
    %29 = tpu.transpose %28, [1, 0, 2] : vector<8x4x8xf32> -> vector<4x8x8xf32>
    "tpu.trace_start"() <{level = 10 : i32, message = "hqd,hkd->hqk"}> : () -> ()
    %cst_19 = arith.constant dense<0.000000e+00> : vector<4x8x8xf32>
    %30 = tpu.matmul %25, %27, %cst_19 {dimension_numbers = #tpu.dot_dimension_numbers<[2], [2], [1], [1], [0, 0, 0, 1, 1, 1], [0], [0]>} : vector<4x8x8xf32>, vector<4x8x8xf32>, vector<4x8x8xf32> -> vector<4x8x8xf32>
    "tpu.trace_stop"() : () -> ()
    %cst_20 = arith.constant dense<0xFF800000> : vector<4x8xf32>
    %31 = vector.multi_reduction <maximumf>, %30, %cst_20 [2] : vector<4x8x8xf32> to vector<4x8xf32>
    %32 = vector.shape_cast %31 : vector<4x8xf32> to vector<4x8x1xf32>
    %33 = vector.broadcast %32 : vector<4x8x1xf32> to vector<4x8x8xf32>
    %34 = arith.subf %30, %33 : vector<4x8x8xf32>
    %35 = math.exp %34 : vector<4x8x8xf32>
    %cst_21 = arith.constant dense<0.000000e+00> : vector<4x8xf32>
    %36 = vector.multi_reduction <add>, %35, %cst_21 [2] : vector<4x8x8xf32> to vector<4x8xf32>
    %37 = vector.shape_cast %36 : vector<4x8xf32> to vector<4x8x1xf32>
    "tpu.trace_start"() <{level = 10 : i32, message = "hqk,hkd->hqd"}> : () -> ()
    %cst_22 = arith.constant dense<0.000000e+00> : vector<4x8x8xf32>
    %38 = tpu.matmul %35, %29, %cst_22 {dimension_numbers = #tpu.dot_dimension_numbers<[2], [1], [1], [2], [0, 0, 0, 1, 1, 2], [0], [0]>} : vector<4x8x8xf32>, vector<4x8x8xf32>, vector<4x8x8xf32> -> vector<4x8x8xf32>
    "tpu.trace_stop"() : () -> ()
    %39 = tpu.reciprocal %37 : vector<4x8x1xf32> -> vector<4x8x1xf32>
    %40 = vector.broadcast %39 : vector<4x8x1xf32> to vector<4x8x8xf32>
    %41 = arith.mulf %38, %40 : vector<4x8x8xf32>
    %42 = tpu.transpose %41, [1, 0, 2] : vector<4x8x8xf32> -> vector<8x4x8xf32>
    %43 = vector.shape_cast %42 : vector<8x4x8xf32> to vector<8x32xf32>
    %c0_23 = arith.constant 0 : index
    %c0_24 = arith.constant 0 : index
    %44 = vector.load %arg9[%c0_23, %c0_24] : memref<32x32xf32, #tpu.memory_space<vmem>>, vector<32x32xf32>
    %cst_25 = arith.constant dense<0.000000e+00> : vector<8x32xf32>
    %45 = tpu.matmul %43, %44, %cst_25 {dimension_numbers = #tpu.dot_dimension_numbers<[1], [0], [0], [1], [0, 0, 1, 1], [], []>} : vector<8x32xf32>, vector<32x32xf32>, vector<8x32xf32> -> vector<8x32xf32>
    %c0_26 = arith.constant 0 : index
    %c0_27 = arith.constant 0 : index
    %46 = vector.load %arg10[%c0_26, %c0_27] : memref<1x32xf32, #tpu.memory_space<vmem>>, vector<1x32xf32>
    %47 = vector.broadcast %46 : vector<1x32xf32> to vector<8x32xf32>
    %48 = arith.addf %45, %47 : vector<8x32xf32>
    %c0_28 = arith.constant 0 : index
    %c0_29 = arith.constant 0 : index
    %c0_30 = arith.constant 0 : index
    %49 = vector.load %arg11[%c0_28, %c0_29, %c0_30] : memref<1x8x32xf32, #tpu.memory_space<vmem>>, vector<1x8x32xf32>
    %50 = vector.shape_cast %49 : vector<1x8x32xf32> to vector<8x32xf32>
    %51 = vector.shape_cast %48 : vector<8x32xf32> to vector<1x8x32xf32>
    tpu.vector_store %arg11[%c0_28, %c0_29, %c0_30], %51 {strides = array<i32>} : memref<1x8x32xf32, #tpu.memory_space<vmem>>, vector<1x8x32xf32>,
    return
  }
  func.func @transform_0(%arg0: i32, %arg1: i32) -> (i32, i32, i32) {
    %c0_i32 = arith.constant 0 : i32
    %c0_i32_0 = arith.constant 0 : i32
    %c0_i32_1 = arith.constant 0 : i32
    return %arg0, %c0_i32, %c0_i32_0 : i32, i32, i32
  }
  func.func @transform_1(%arg0: i32, %arg1: i32) -> (i32, i32) {
    %c0_i32 = arith.constant 0 : i32
    %c0_i32_0 = arith.constant 0 : i32
    %c0_i32_1 = arith.constant 0 : i32
    return %c0_i32, %c0_i32_0 : i32, i32
  }
  func.func @transform_2(%arg0: i32, %arg1: i32) -> (i32, i32) {
    %c0_i32 = arith.constant 0 : i32
    %c0_i32_0 = arith.constant 0 : i32
    %c0_i32_1 = arith.constant 0 : i32
    return %c0_i32, %c0_i32_0 : i32, i32
  }
  func.func @transform_3(%arg0: i32, %arg1: i32) -> (i32, i32) {
    %c0_i32 = arith.constant 0 : i32
    %c0_i32_0 = arith.constant 0 : i32
    %c0_i32_1 = arith.constant 0 : i32
    return %c0_i32, %c0_i32_0 : i32, i32
  }
  func.func @transform_4(%arg0: i32, %arg1: i32) -> (i32, i32) {
    %c0_i32 = arith.constant 0 : i32
    %c0_i32_0 = arith.constant 0 : i32
    %c0_i32_1 = arith.constant 0 : i32
    return %c0_i32, %c0_i32_0 : i32, i32
  }
  func.func @transform_5(%arg0: i32, %arg1: i32) -> (i32, i32) {
    %c0_i32 = arith.constant 0 : i32
    %c0_i32_0 = arith.constant 0 : i32
    %c0_i32_1 = arith.constant 0 : i32
    return %c0_i32, %c0_i32_0 : i32, i32
  }
  func.func @transform_6(%arg0: i32, %arg1: i32) -> (i32, i32) {
    %c0_i32 = arith.constant 0 : i32
    %c0_i32_0 = arith.constant 0 : i32
    %c0_i32_1 = arith.constant 0 : i32
    return %c0_i32, %c0_i32_0 : i32, i32
  }
  func.func @transform_7(%arg0: i32, %arg1: i32) -> (i32, i32) {
    %c0_i32 = arith.constant 0 : i32
    %c0_i32_0 = arith.constant 0 : i32
    %c0_i32_1 = arith.constant 0 : i32
    return %c0_i32, %c0_i32_0 : i32, i32
  }
  func.func @transform_8(%arg0: i32, %arg1: i32) -> (i32, i32) {
    %c0_i32 = arith.constant 0 : i32
    %c0_i32_0 = arith.constant 0 : i32
    %c0_i32_1 = arith.constant 0 : i32
    return %c0_i32, %c0_i32_0 : i32, i32
  }
  func.func @transform_9(%arg0: i32, %arg1: i32) -> (i32, i32, i32) {
    %c0_i32 = arith.constant 0 : i32
    %c0_i32_0 = arith.constant 0 : i32
    return %arg0, %arg1, %c0_i32 : i32, i32, i32
  }
}

</mosaic_0001>

<llo_original>
// kernel: tpu_custom_call.1
$region0: #{tpu_custom_call.1}
  #allocation0 [shape = 'u32[]', space=smem, size = 0x4, offset = 0x4, fixed_abs, tag = 'smem constant byte address 0x4 - core index']
  #allocation1 [shape = 'u32[72,128]{1,0:T(1,128)}', space=vmem, size = 0x9000, scoped, tag = 'internal scratch']
  %s0 = inlined_call_operand.hbm [shape: f32[2,8,32], index: 0, kind: input, shape index: {}]
  %s1 = inlined_call_operand.hbm [shape: f32[32,32], index: 1, kind: input, shape index: {}]
  %s2 = inlined_call_operand.vmem [shape: f32[1,32], index: 2, kind: input, shape index: {}]
  %s3 = inlined_call_operand.hbm [shape: f32[32,32], index: 3, kind: input, shape index: {}]
  %s4 = inlined_call_operand.vmem [shape: f32[1,32], index: 4, kind: input, shape index: {}]
  %s5 = inlined_call_operand.hbm [shape: f32[32,32], index: 5, kind: input, shape index: {}]
  %s6 = inlined_call_operand.vmem [shape: f32[1,32], index: 6, kind: input, shape index: {}]
  %s7 = inlined_call_operand.hbm [shape: f32[32,32], index: 7, kind: input, shape index: {}]
  %s8 = inlined_call_operand.vmem [shape: f32[1,32], index: 8, kind: input, shape index: {}]
  %s9 = inlined_call_operand.hbm [shape: f32[2,8,32], index: 9, kind: output, shape index: {}]
  %s10 = sld [smem:[#allocation0]]
  $region89: #{tpu_custom_call.1} parent=0
    _
  %s12 = ssub.s32 1, %s10
  %s13 = scalar_select 0, %s12, %s10
  $region1: #{tpu_custom_call.1} parent=0
    #allocation2 [shape = 'u8[8192]{0}', space=vmem, size = 0x2000, scoped, tag = 'input window, operand 0']
    #allocation3 [shape = 's32[2]{0}', space=sflag, size = 0x8, scoped, tag = 'scoped memory for tpu_custom_call.1']
    #allocation4 [shape = 's32[2]{0}', space=sflag, size = 0x8, scoped, tag = 'scoped memory for tpu_custom_call.1']
    #allocation5 [shape = 'u8[16384]{0}', space=vmem, size = 0x4000, scoped, tag = 'input window, operand 1, single buffered']
    #allocation6 [shape = 's32[1]{0}', space=sflag, size = 0x4, scoped, tag = 'scoped memory for tpu_custom_call.1']
    #allocation7 [shape = 'u8[16384]{0}', space=vmem, size = 0x4000, scoped, tag = 'input window, operand 3, single buffered']
    #allocation8 [shape = 'u8[16384]{0}', space=vmem, size = 0x4000, scoped, tag = 'input window, operand 5, single buffered']
    #allocation9 [shape = 's32[1]{0}', space=sflag, size = 0x4, scoped, tag = 'scoped memory for tpu_custom_call.1']
    #allocation10 [shape = 'u8[16384]{0}', space=vmem, size = 0x4000, scoped, tag = 'input window, operand 7, single buffered']
    #allocation11 [shape = 'u8[8192]{0}', space=vmem, size = 0x2000, scoped, tag = 'output window, operand 0']
    %14 = vsyncpa [#allocation3], 0
    %s15 = scalar_lea.sflag [#allocation3], 1
    %16 = vsyncpa %s15, 0
    %17 = vsyncpa [#allocation6], 0
    %18 = vsyncpa [#allocation9], 0
    %19 = vsyncpa [#allocation4], 0
    %s20 = scalar_lea.sflag [#allocation4], 1
    %21 = vsyncpa %s20, 0
    loop: start=0, step=1, limit=4
    $region2: #{tpu_custom_call.1} parent=1 // loop_pre_header
      _
    $region3: #{tpu_custom_call.1} parent=1 // loop_header
      %s23 = sphi 0, %s27
      %p24 = scmp.ge.s32.totalorder %s23, 4
      %s30 = sphi 0, %s42
      %s31 = sphi 0, %s38
      %s32 = sphi 0, %s30
      %s33 = sphi 0, %s31
      %s34 = sphi 0, %s32
      %s35 = sphi 0, %s33
      %s45 = sphi 0, %s47
      %s48 = sphi 0, %s45
      %s49 = sphi 0, %s48
      %s65 = sphi 0, %s49
      %s69 = sphi 0, %s69
      %s71 = sphi 0, %s69
      %s72 = sphi 0, %s71
      %s86 = sphi 0, %s72
      %s90 = sphi 0, %s90
      %s92 = sphi 0, %s90
      %s93 = sphi 0, %s92
      %s107 = sphi 0, %s93
      %s111 = sphi 0, %s111
      %s113 = sphi 0, %s111
      %s114 = sphi 0, %s113
      %s128 = sphi 0, %s114
      %s132 = sphi 0, %s132
      %s134 = sphi 0, %s132
      %s135 = sphi 0, %s134
      %s149 = sphi 0, %s135
      %s153 = sphi 0, %s153
      %s155 = sphi 0, %s153
      %s156 = sphi 0, %s155
      %s170 = sphi 0, %s156
      %s174 = sphi 0, %s174
      %s176 = sphi 0, %s174
      %s177 = sphi 0, %s176
      %s191 = sphi 0, %s177
      %s195 = sphi 0, %s195
      %s197 = sphi 0, %s195
      %s198 = sphi 0, %s197
      %s212 = sphi 0, %s198
      %s216 = sphi 0, %s216
      %s218 = sphi 0, %s216
      %s219 = sphi 0, %s218
      %s233 = sphi 0, %s219
      %s241 = sphi 0, %s243
      %s244 = sphi 0, %s241
      %s245 = sphi 0, %s244
      %s261 = sphi 0, %s245
    $region4: #{tpu_custom_call.1} parent=1 // loop_header_branch
      %26 = sbr.rel (%p24) target = $region8
    $region5: #{tpu_custom_call.1} parent=1 // loop_body
      %s28 = ssub.s32 %s23, 1
      %s29 = ssub.s32 %s23, 2
      %s36 = sadd.s32 1, %s31
      %p37 = scmp.ge.s32.totalorder %s36, 1
      %s38 = scalar_select %p37, 0, %s36
      %s39 = sadd.s32 1, %s30
      %s40 = scalar_select %p37, %s39, %s30
      %p41 = scmp.ge.s32.totalorder %s40, 2
      %s42 = scalar_select %p41, 0, %s40
      %s43 = ssub.s32 %s30, %s42
      %p44 = scmp.eq.s32.totalorder %s43, 0
      %s46 = sadd.s32 %s45, 1
      %s47 = scalar_select %p44, %s45, %s46
      %p50 = pneg %p44
      %p51 = scmp.eq.s32.totalorder %s23, 1
      %p52 = por %p50, %p51
      %p53 = scmp.ne.s32.totalorder %s45, %s48
      %p54 = scmp.eq.s32.totalorder %s23, 0
      %p55 = por %p53, %p54
      %p56 = scmp.ne.s32.totalorder %s45, %s48
      %p57 = scmp.eq.s32.totalorder %s28, 1
      %p58 = por %p56, %p57
      %p59 = scmp.ne.s32.totalorder %s48, %s49
      %p60 = scmp.eq.s32.totalorder %s28, 0
      %p61 = por %p59, %p60
      %p62 = scmp.ne.s32.totalorder %s48, %s49
      %p63 = scmp.eq.s32.totalorder %s29, 1
      %p64 = por %p62, %p63
      %p66 = scmp.ne.s32.totalorder %s49, %s65
      %p67 = scmp.eq.s32.totalorder %s29, 0
      %p68 = por %p66, %p67
      %s70 = sadd.s32 %s69, 1
      %p73 = scmp.eq.s32.totalorder %s23, 1
      %p74 = scmp.ne.s32.totalorder %s69, %s71
      %p75 = scmp.eq.s32.totalorder %s23, 0
      %p76 = por %p74, %p75
      %p77 = scmp.ne.s32.totalorder %s69, %s71
      %p78 = scmp.eq.s32.totalorder %s28, 1
      %p79 = por %p77, %p78
      %p80 = scmp.ne.s32.totalorder %s71, %s72
      %p81 = scmp.eq.s32.totalorder %s28, 0
      %p82 = por %p80, %p81
      %p83 = scmp.ne.s32.totalorder %s71, %s72
      %p84 = scmp.eq.s32.totalorder %s29, 1
      %p85 = por %p83, %p84
      %p87 = scmp.ne.s32.totalorder %s72, %s86
      %p88 = scmp.eq.s32.totalorder %s29, 0
      %p89 = por %p87, %p88
      %s91 = sadd.s32 %s90, 1
      %p94 = scmp.eq.s32.totalorder %s23, 1
      %p95 = scmp.ne.s32.totalorder %s90, %s92
      %p96 = scmp.eq.s32.totalorder %s23, 0
      %p97 = por %p95, %p96
      %p98 = scmp.ne.s32.totalorder %s90, %s92
      %p99 = scmp.eq.s32.totalorder %s28, 1
      %p100 = por %p98, %p99
      %p101 = scmp.ne.s32.totalorder %s92, %s93
      %p102 = scmp.eq.s32.totalorder %s28, 0
      %p103 = por %p101, %p102
      %p104 = scmp.ne.s32.totalorder %s92, %s93
      %p105 = scmp.eq.s32.totalorder %s29, 1
      %p106 = por %p104, %p105
      %p108 = scmp.ne.s32.totalorder %s93, %s107
      %p109 = scmp.eq.s32.totalorder %s29, 0
      %p110 = por %p108, %p109
      %s112 = sadd.s32 %s111, 1
      %p115 = scmp.eq.s32.totalorder %s23, 1
      %p116 = scmp.ne.s32.totalorder %s111, %s113
      %p117 = scmp.eq.s32.totalorder %s23, 0
      %p118 = por %p116, %p117
      %p119 = scmp.ne.s32.totalorder %s111, %s113
      %p120 = scmp.eq.s32.totalorder %s28, 1
      %p121 = por %p119, %p120
      %p122 = scmp.ne.s32.totalorder %s113, %s114
      %p123 = scmp.eq.s32.totalorder %s28, 0
      %p124 = por %p122, %p123
      %p125 = scmp.ne.s32.totalorder %s113, %s114
      %p126 = scmp.eq.s32.totalorder %s29, 1
      %p127 = por %p125, %p126
      %p129 = scmp.ne.s32.totalorder %s114, %s128
      %p130 = scmp.eq.s32.totalorder %s29, 0
      %p131 = por %p129, %p130
      %s133 = sadd.s32 %s132, 1
      %p136 = scmp.eq.s32.totalorder %s23, 1
      %p137 = scmp.ne.s32.totalorder %s132, %s134
      %p138 = scmp.eq.s32.totalorder %s23, 0
      %p139 = por %p137, %p138
      %p140 = scmp.ne.s32.totalorder %s132, %s134
      %p141 = scmp.eq.s32.totalorder %s28, 1
      %p142 = por %p140, %p141
      %p143 = scmp.ne.s32.totalorder %s134, %s135
      %p144 = scmp.eq.s32.totalorder %s28, 0
      %p145 = por %p143, %p144
      %p146 = scmp.ne.s32.totalorder %s134, %s135
      %p147 = scmp.eq.s32.totalorder %s29, 1
      %p148 = por %p146, %p147
      %p150 = scmp.ne.s32.totalorder %s135, %s149
      %p151 = scmp.eq.s32.totalorder %s29, 0
      %p152 = por %p150, %p151
      %s154 = sadd.s32 %s153, 1
      %p157 = scmp.eq.s32.totalorder %s23, 1
      %p158 = scmp.ne.s32.totalorder %s153, %s155
      %p159 = scmp.eq.s32.totalorder %s23, 0
      %p160 = por %p158, %p159
      %p161 = scmp.ne.s32.totalorder %s153, %s155
      %p162 = scmp.eq.s32.totalorder %s28, 1
      %p163 = por %p161, %p162
      %p164 = scmp.ne.s32.totalorder %s155, %s156
      %p165 = scmp.eq.s32.totalorder %s28, 0
      %p166 = por %p164, %p165
      %p167 = scmp.ne.s32.totalorder %s155, %s156
      %p168 = scmp.eq.s32.totalorder %s29, 1
      %p169 = por %p167, %p168
      %p171 = scmp.ne.s32.totalorder %s156, %s170
      %p172 = scmp.eq.s32.totalorder %s29, 0
      %p173 = por %p171, %p172
      %s175 = sadd.s32 %s174, 1
      %p178 = scmp.eq.s32.totalorder %s23, 1
      %p179 = scmp.ne.s32.totalorder %s174, %s176
      %p180 = scmp.eq.s32.totalorder %s23, 0
      %p181 = por %p179, %p180
      %p182 = scmp.ne.s32.totalorder %s174, %s176
      %p183 = scmp.eq.s32.totalorder %s28, 1
      %p184 = por %p182, %p183
      %p185 = scmp.ne.s32.totalorder %s176, %s177
      %p186 = scmp.eq.s32.totalorder %s28, 0
      %p187 = por %p185, %p186
      %p188 = scmp.ne.s32.totalorder %s176, %s177
      %p189 = scmp.eq.s32.totalorder %s29, 1
      %p190 = por %p188, %p189
      %p192 = scmp.ne.s32.totalorder %s177, %s191
      %p193 = scmp.eq.s32.totalorder %s29, 0
      %p194 = por %p192, %p193
      %s196 = sadd.s32 %s195, 1
      %p199 = scmp.eq.s32.totalorder %s23, 1
      %p200 = scmp.ne.s32.totalorder %s195, %s197
      %p201 = scmp.eq.s32.totalorder %s23, 0
      %p202 = por %p200, %p201
      %p203 = scmp.ne.s32.totalorder %s195, %s197
      %p204 = scmp.eq.s32.totalorder %s28, 1
      %p205 = por %p203, %p204
      %p206 = scmp.ne.s32.totalorder %s197, %s198
      %p207 = scmp.eq.s32.totalorder %s28, 0
      %p208 = por %p206, %p207
      %p209 = scmp.ne.s32.totalorder %s197, %s198
      %p210 = scmp.eq.s32.totalorder %s29, 1
      %p211 = por %p209, %p210
      %p213 = scmp.ne.s32.totalorder %s198, %s212
      %p214 = scmp.eq.s32.totalorder %s29, 0
      %p215 = por %p213, %p214
      %s217 = sadd.s32 %s216, 1
      %p220 = scmp.eq.s32.totalorder %s23, 1
      %p221 = scmp.ne.s32.totalorder %s216, %s218
      %p222 = scmp.eq.s32.totalorder %s23, 0
      %p223 = por %p221, %p222
      %p224 = scmp.ne.s32.totalorder %s216, %s218
      %p225 = scmp.eq.s32.totalorder %s28, 1
      %p226 = por %p224, %p225
      %p227 = scmp.ne.s32.totalorder %s218, %s219
      %p228 = scmp.eq.s32.totalorder %s28, 0
      %p229 = por %p227, %p228
      %p230 = scmp.ne.s32.totalorder %s218, %s219
      %p231 = scmp.eq.s32.totalorder %s29, 1
      %p232 = por %p230, %p231
      %p234 = scmp.ne.s32.totalorder %s219, %s233
      %p235 = scmp.eq.s32.totalorder %s29, 0
      %p236 = por %p234, %p235
      %s237 = ssub.s32 %s30, %s42
      %s238 = ssub.s32 %s31, %s38
      %s239 = sor.u32 %s237, %s238
      %p240 = scmp.eq.s32.totalorder %s239, 0
      %s242 = sadd.s32 %s241, 1
      %s243 = scalar_select %p240, %s241, %s242
      %p246 = pneg %p240
      %p247 = scmp.eq.s32.totalorder %s23, 1
      %p248 = por %p246, %p247
      %p249 = scmp.ne.s32.totalorder %s241, %s244
      %p250 = scmp.eq.s32.totalorder %s23, 0
      %p251 = por %p249, %p250
      %p252 = scmp.ne.s32.totalorder %s241, %s244
      %p253 = scmp.eq.s32.totalorder %s28, 1
      %p254 = por %p252, %p253
      %p255 = scmp.ne.s32.totalorder %s244, %s245
      %p256 = scmp.eq.s32.totalorder %s28, 0
      %p257 = por %p255, %p256
      %p258 = scmp.ne.s32.totalorder %s244, %s245
      %p259 = scmp.eq.s32.totalorder %s29, 1
      %p260 = por %p258, %p259
      %p262 = scmp.ne.s32.totalorder %s245, %s261
      %p263 = scmp.eq.s32.totalorder %s29, 0
      %p264 = por %p262, %p263
      %p265 = scmp.le.s32.totalorder 1, %s23
      %p266 = scmp.lt.s32.totalorder %s23, 3
      %p267 = pnand %p265, %p266
      %p268 = pneg %p267
      // Predicated region
      $region9: #{tpu_custom_call.1} parent=5 // pred_check
        _
      $region10: #{tpu_custom_call.1} parent=5 // pred_check_branch
        %270 = sbr.rel (%p267) target = $region12
      $region11: #{tpu_custom_call.1} parent=5 // pred_region
        %s271 = ssub.s32 %s23, 1
        // Predicated region
        $region13: #{tpu_custom_call.1} parent=11 // pred_check
          %p272 = pneg %p82
        $region14: #{tpu_custom_call.1} parent=11 // pred_check_branch
          %274 = sbr.rel (%p272) target = $region16
        $region15: #{tpu_custom_call.1} parent=11 // pred_region
          %276 = vsyncadd [#allocation6], 0
          %s277 = sshll.u32 %s1, 4
          %s278 = int_to_ptr.hbm [resolvable:$true] %s277
          %s279 = sshll.u32 [#allocation5], 4
          %s280 = int_to_ptr.vmem [resolvable:$true] %s279
          %285 = dma.hbm_to_vmem [thread:$0]  %s278, 512, %s280, [#allocation6], 128, 128, 8
        $region16: #{tpu_custom_call.1} parent=11 // pred_fallthru
          _
        // Predicated region
        $region17: #{tpu_custom_call.1} parent=11 // pred_check
          %p286 = pneg %p103
        $region18: #{tpu_custom_call.1} parent=11 // pred_check_branch
          %288 = sbr.rel (%p286) target = $region20
        $region19: #{tpu_custom_call.1} parent=11 // pred_region
          _
        $region20: #{tpu_custom_call.1} parent=11 // pred_fallthru
          _
        // Predicated region
        $region21: #{tpu_custom_call.1} parent=11 // pred_check
          %p289 = pneg %p124
        $region22: #{tpu_custom_call.1} parent=11 // pred_check_branch
          %291 = sbr.rel (%p289) target = $region24
        $region23: #{tpu_custom_call.1} parent=11 // pred_region
          %293 = vsyncadd [#allocation6], 0
          %s294 = sshll.u32 %s3, 4
          %s295 = int_to_ptr.hbm [resolvable:$true] %s294
          %s296 = sshll.u32 [#allocation7], 4
          %s297 = int_to_ptr.vmem [resolvable:$true] %s296
          %302 = dma.hbm_to_vmem [thread:$0]  %s295, 512, %s297, [#allocation6], 128, 128, 8
        $region24: #{tpu_custom_call.1} parent=11 // pred_fallthru
          _
        // Predicated region
        $region25: #{tpu_custom_call.1} parent=11 // pred_check
          %p303 = pneg %p145
        $region26: #{tpu_custom_call.1} parent=11 // pred_check_branch
          %305 = sbr.rel (%p303) target = $region28
        $region27: #{tpu_custom_call.1} parent=11 // pred_region
          _
        $region28: #{tpu_custom_call.1} parent=11 // pred_fallthru
          _
        // Predicated region
        $region29: #{tpu_custom_call.1} parent=11 // pred_check
          %p306 = pneg %p166
        $region30: #{tpu_custom_call.1} parent=11 // pred_check_branch
          %308 = sbr.rel (%p306) target = $region32
        $region31: #{tpu_custom_call.1} parent=11 // pred_region
          %310 = vsyncadd [#allocation9], 0
          %s311 = sshll.u32 %s5, 4
          %s312 = int_to_ptr.hbm [resolvable:$true] %s311
          %s313 = sshll.u32 [#allocation8], 4
          %s314 = int_to_ptr.vmem [resolvable:$true] %s313
          %319 = dma.hbm_to_vmem [thread:$0]  %s312, 512, %s314, [#allocation9], 128, 128, 8
        $region32: #{tpu_custom_call.1} parent=11 // pred_fallthru
          _
        // Predicated region
        $region33: #{tpu_custom_call.1} parent=11 // pred_check
          %p320 = pneg %p187
        $region34: #{tpu_custom_call.1} parent=11 // pred_check_branch
          %322 = sbr.rel (%p320) target = $region36
        $region35: #{tpu_custom_call.1} parent=11 // pred_region
          _
        $region36: #{tpu_custom_call.1} parent=11 // pred_fallthru
          _
        // Predicated region
        $region37: #{tpu_custom_call.1} parent=11 // pred_check
          %p323 = pneg %p208
        $region38: #{tpu_custom_call.1} parent=11 // pred_check_branch
          %325 = sbr.rel (%p323) target = $region40
        $region39: #{tpu_custom_call.1} parent=11 // pred_region
          %327 = vsyncadd [#allocation9], 0
          %s328 = sshll.u32 %s7, 4
          %s329 = int_to_ptr.hbm [resolvable:$true] %s328
          %s330 = sshll.u32 [#allocation10], 4
          %s331 = int_to_ptr.vmem [resolvable:$true] %s330
          %336 = dma.hbm_to_vmem [thread:$0]  %s329, 512, %s331, [#allocation9], 128, 128, 8
        $region40: #{tpu_custom_call.1} parent=11 // pred_fallthru
          _
        // Predicated region
        $region41: #{tpu_custom_call.1} parent=11 // pred_check
          %p337 = pneg %p229
        $region42: #{tpu_custom_call.1} parent=11 // pred_check_branch
          %339 = sbr.rel (%p337) target = $region44
        $region43: #{tpu_custom_call.1} parent=11 // pred_region
          _
        $region44: #{tpu_custom_call.1} parent=11 // pred_fallthru
          _
      $region12: #{tpu_custom_call.1} parent=5 // pred_fallthru
        _
      %p340 = scmp.lt.s32.totalorder %s23, 2
      // Predicated region
      $region45: #{tpu_custom_call.1} parent=5 // pred_check
        %p341 = pneg %p340
      $region46: #{tpu_custom_call.1} parent=5 // pred_check_branch
        %343 = sbr.rel (%p341) target = $region48
      $region47: #{tpu_custom_call.1} parent=5 // pred_region
        // Predicated region
        $region49: #{tpu_custom_call.1} parent=47 // pred_check
          %p344 = pneg %p55
        $region50: #{tpu_custom_call.1} parent=47 // pred_check_branch
          %346 = sbr.rel (%p344) target = $region52
        $region51: #{tpu_custom_call.1} parent=47 // pred_region
          %s347 = sand.u32 %s45, 1
          %s348 = scalar_lea.sflag [#allocation3], %s347
          %s349 = sand.u32 %s45, 1
          %s350 = smul.addr %s349, 8
          %s351 = scalar_lea.vmem [#allocation2], %s350
          %353 = vsyncadd %s348, 0
          %s354 = smul.addr %s30, 8
          %s355 = scalar_lea.hbm %s0, %s354
          %s357 = sshll.u32 %s355, 4
          %s358 = int_to_ptr.hbm [resolvable:$true] %s357
          %s359 = sshll.u32 %s351, 4
          %s360 = int_to_ptr.vmem [resolvable:$true] %s359
          %362 = dma.hbm_to_vmem [thread:$0]  %s358, 128, %s360, %s348
        $region52: #{tpu_custom_call.1} parent=47 // pred_fallthru
          _
      $region48: #{tpu_custom_call.1} parent=5 // pred_fallthru
        _
      %p363 = scmp.le.s32.totalorder 1, %s23
      %p364 = scmp.lt.s32.totalorder %s23, 3
      %p365 = pnand %p363, %p364
      %p366 = pneg %p365
      // Predicated region
      $region53: #{tpu_custom_call.1} parent=5 // pred_check
        _
      $region54: #{tpu_custom_call.1} parent=5 // pred_check_branch
        %368 = sbr.rel (%p365) target = $region56
      $region55: #{tpu_custom_call.1} parent=5 // pred_region
        %s369 = ssub.s32 %s23, 1
        %s370 = sand.u32 %s48, 1
        %s371 = scalar_lea.sflag [#allocation3], %s370
        %s372 = sand.u32 %s48, 1
        %s373 = smul.addr %s372, 8
        %s374 = scalar_lea.vmem [#allocation2], %s373
        // Predicated region
        $region57: #{tpu_custom_call.1} parent=55 // pred_check
          %p375 = pneg %p61
        $region58: #{tpu_custom_call.1} parent=55 // pred_check_branch
          %377 = sbr.rel (%p375) target = $region60
        $region59: #{tpu_custom_call.1} parent=55 // pred_region
          %379 = dma.done %s371, 128
        $region60: #{tpu_custom_call.1} parent=55 // pred_fallthru
          _
        // Predicated region
        $region61: #{tpu_custom_call.1} parent=55 // pred_check
          %p380 = pneg %p82
        $region62: #{tpu_custom_call.1} parent=55 // pred_check_branch
          %382 = sbr.rel (%p380) target = $region64
        $region63: #{tpu_custom_call.1} parent=55 // pred_region
          %384 = dma.done [#allocation6], 512
        $region64: #{tpu_custom_call.1} parent=55 // pred_fallthru
          _
        // Predicated region
        $region65: #{tpu_custom_call.1} parent=55 // pred_check
          %p385 = pneg %p124
        $region66: #{tpu_custom_call.1} parent=55 // pred_check_branch
          %387 = sbr.rel (%p385) target = $region68
        $region67: #{tpu_custom_call.1} parent=55 // pred_region
          %389 = dma.done [#allocation6], 512
        $region68: #{tpu_custom_call.1} parent=55 // pred_fallthru
          _
        // Predicated region
        $region69: #{tpu_custom_call.1} parent=55 // pred_check
          %p390 = pneg %p166
        $region70: #{tpu_custom_call.1} parent=55 // pred_check_branch
          %392 = sbr.rel (%p390) target = $region72
        $region71: #{tpu_custom_call.1} parent=55 // pred_region
          %394 = dma.done [#allocation9], 512
        $region72: #{tpu_custom_call.1} parent=55 // pred_fallthru
          _
        // Predicated region
        $region73: #{tpu_custom_call.1} parent=55 // pred_check
          %p395 = pneg %p208
        $region74: #{tpu_custom_call.1} parent=55 // pred_check_branch
          %397 = sbr.rel (%p395) target = $region76
        $region75: #{tpu_custom_call.1} parent=55 // pred_region
          %399 = dma.done [#allocation9], 512
        $region76: #{tpu_custom_call.1} parent=55 // pred_fallthru
          _
        %s400 = sand.u32 %s48, 1
        %s401 = scalar_lea.sflag [#allocation3], %s400
        %s402 = sand.u32 %s48, 1
        %s403 = smul.addr %s402, 8
        %s404 = scalar_lea.vmem [#allocation2], %s403
        %p405 = pneg %p61
        %p406 = pneg %p58
        %p407 = pneg %p82
        %p408 = pneg %p79
        %p409 = pneg %p103
        %p410 = pneg %p100
        %p411 = pneg %p124
        %p412 = pneg %p121
        %p413 = pneg %p145
        %p414 = pneg %p142
        %p415 = pneg %p166
        %p416 = pneg %p163
        %p417 = pneg %p187
        %p418 = pneg %p184
        %p419 = pneg %p208
        %p420 = pneg %p205
        %p421 = pneg %p229
        %p422 = pneg %p226
        %p423 = pneg %p257
        %p424 = pneg %p254
        %s425 = sand.u32 %s244, 1
        %s426 = scalar_lea.sflag [#allocation4], %s425
        %s427 = sand.u32 %s244, 1
        %s428 = smul.addr %s427, 8
        %s429 = scalar_lea.vmem [#allocation11], %s428
        %v430 = vld [vmem:[%s374] sm:$0xff]
        %v431 = vld [vmem:[#allocation7] sm:$0xff]
        %v432 = vld [vmem:[#allocation7 + $0x8] sm:$0xff]
        %v433 = vld [vmem:[#allocation7 + $0x10] sm:$0xff]
        %v434 = vld [vmem:[#allocation7 + $0x18] sm:$0xff]
        %v435 = vld [vmem:[%s4] sm:$0x1]
        %v437 = vperm.slane %v435, 0
        %vm439 = vcmask 261120
        %v441 = vsel %vm439, %v430, 0
        %443 = vmatpush.msra.mxu0 0.0
        %444 = vmatpush.msra.mxu0 0.0
        %445 = vmatpush.msra.mxu0 0.0
        %446 = vmatpush.msra.mxu0 0.0
        %447 = vmatpush.msra.mxu0 0.0
        %448 = vmatpush.msra.mxu0 0.0
        %449 = vmatpush.msra.mxu0 0.0
        %450 = vmatpush.msra.mxu0 0.0
        %451 = vmatpush.msra.mxu0 0.0
        %452 = vmatpush.msra.mxu0 0.0
        %453 = vmatpush.msra.mxu0 0.0
        %454 = vmatpush.msra.mxu0 0.0
        %455 = vmatpush.msra.mxu0 %v434
        %456 = vmatpush.msra.mxu0 %v433
        %457 = vmatpush.msra.mxu0 %v432
        %458 = vmatpush.msra.mxu0 %v431
        %459 = vmatmul.f32.gmra.mxu0 %v441
        %v460 = vpop.f32.mrf.mxu0
        %v461 = vadd.f32 %v437, %v460
        %462 = vdwg.mxu0
        %v463 = vld [vmem:[#allocation8] sm:$0xff]
        %v464 = vld [vmem:[#allocation8 + $0x8] sm:$0xff]
        %v465 = vld [vmem:[#allocation8 + $0x10] sm:$0xff]
        %v466 = vld [vmem:[#allocation8 + $0x18] sm:$0xff]
        %v467 = vld [vmem:[%s6] sm:$0x1]
        %v469 = vperm.slane %v467, 0
        %471 = vmatpush.msra.mxu0 0.0
        %472 = vmatpush.msra.mxu0 0.0
        %473 = vmatpush.msra.mxu0 0.0
        %474 = vmatpush.msra.mxu0 0.0
        %475 = vmatpush.msra.mxu0 0.0
        %476 = vmatpush.msra.mxu0 0.0
        %477 = vmatpush.msra.mxu0 0.0
        %478 = vmatpush.msra.mxu0 0.0
        %479 = vmatpush.msra.mxu0 0.0
        %480 = vmatpush.msra.mxu0 0.0
        %481 = vmatpush.msra.mxu0 0.0
        %482 = vmatpush.msra.mxu0 0.0
        %483 = vmatpush.msra.mxu0 %v466
        %484 = vmatpush.msra.mxu0 %v465
        %485 = vmatpush.msra.mxu0 %v464
        %486 = vmatpush.msra.mxu0 %v463
        %487 = vmatmul.f32.gmra.mxu0 %v441
        %v488 = vpop.f32.mrf.mxu0
        %v489 = vadd.f32 %v469, %v488
        %490 = vdwg.mxu0
        %s491 = smul.u32 %s33, 8
        %s492 = scalar_lea.vmem %s374, %s491 [#allocation2]
        %v493 = vld [vmem:[%s492] sm:$0xff]
        %v494 = vld [vmem:[#allocation5] sm:$0xff]
        %v495 = vld [vmem:[#allocation5 + $0x8] sm:$0xff]
        %v496 = vld [vmem:[#allocation5 + $0x10] sm:$0xff]
        %v497 = vld [vmem:[#allocation5 + $0x18] sm:$0xff]
        %v498 = vld [vmem:[%s2] sm:$0x1]
        %v500 = vperm.slane %v498, 0
        %v503 = vsel %vm439, %v493, 0
        %505 = vmatpush.msra.mxu0 0.0
        %506 = vmatpush.msra.mxu0 0.0
        %507 = vmatpush.msra.mxu0 0.0
        %508 = vmatpush.msra.mxu0 0.0
        %509 = vmatpush.msra.mxu0 0.0
        %510 = vmatpush.msra.mxu0 0.0
        %511 = vmatpush.msra.mxu0 0.0
        %512 = vmatpush.msra.mxu0 0.0
        %513 = vmatpush.msra.mxu0 0.0
        %514 = vmatpush.msra.mxu0 0.0
        %515 = vmatpush.msra.mxu0 0.0
        %516 = vmatpush.msra.mxu0 0.0
        %517 = vmatpush.msra.mxu0 %v497
        %518 = vmatpush.msra.mxu0 %v496
        %519 = vmatpush.msra.mxu0 %v495
        %520 = vmatpush.msra.mxu0 %v494
        %521 = vmatmul.f32.gmra.mxu0 %v503
        %v522 = vpop.f32.mrf.mxu0
        %v523 = vadd.f32 %v500, %v522
        %524 = vdwg.mxu0
        %v525 = vmul.f32 %v523, 0.35355338
        %527 = vrot.lane.b32.xlu0 %v525, 120
        %v528 = vpop.permute.xlu0 %527
        %530 = vrot.lane.b32.xlu0 %v525, 112
        %v531 = vpop.permute.xlu0 %530
        %533 = vrot.lane.b32.xlu0 %v525, 104
        %v534 = vpop.permute.xlu0 %533
        %v536 = vrot.slane %v531, 4
        %vm537 = vcmask 1047556
        %v538 = vsel %vm537, %v536, %v525
        %v539 = vrot.slane %v525, 4
        %v540 = vsel %vm537, %v531, %v539
        %v542 = vunpack.c.l.s4 1983009808
        %v543 = vunpack.c.0.s8 %v542
        %v544 = vperm.slane %v538, %v543
        %v546 = vunpack.c.l.s4 1983009808
        %v547 = vunpack.c.0.s8 %v546
        %v548 = vperm.slane %v540, %v547
        %v549 = vrot.slane %v534, 4
        %v550 = vsel %vm537, %v549, %v528
        %v551 = vrot.slane %v528, 4
        %v552 = vsel %vm537, %v534, %v551
        %v554 = vunpack.c.l.s4 1983009808
        %v555 = vunpack.c.0.s8 %v554
        %v556 = vperm.slane %v550, %v555
        %v558 = vunpack.c.l.s4 1983009808
        %v559 = vunpack.c.0.s8 %v558
        %v560 = vperm.slane %v552, %v559
        %v561 = vrot.slane %v556, 4
        %v562 = vsel %vm537, %v561, %v544
        %v563 = vrot.slane %v544, 4
        %v564 = vsel %vm537, %v556, %v563
        %v566 = vunpack.c.l.s4 1934713408
        %v567 = vunpack.c.0.s8 %v566
        %v568 = vperm.slane %v562, %v567
        %v570 = vunpack.c.l.s4 1934713408
        %v571 = vunpack.c.0.s8 %v570
        %v572 = vperm.slane %v564, %v571
        %v573 = vrot.slane %v560, 4
        %v574 = vsel %vm537, %v573, %v548
        %v575 = vrot.slane %v548, 4
        %v576 = vsel %vm537, %v560, %v575
        %v578 = vunpack.c.l.s4 1934713408
        %v579 = vunpack.c.0.s8 %v578
        %v580 = vperm.slane %v574, %v579
        %v582 = vunpack.c.l.s4 1934713408
        %v583 = vunpack.c.0.s8 %v582
        %v584 = vperm.slane %v576, %v583
        %v585 = vrot.slane %v568, 4
        %v586 = vsel %vm537, 0.0, %v585
        %v587 = vrot.slane %v572, 4
        %v588 = vsel %vm537, 0.0, %v587
        %v589 = vrot.slane %v580, 4
        %v590 = vsel %vm537, 0.0, %v589
        %v591 = vrot.slane %v584, 4
        %v592 = vsel %vm537, 0.0, %v591
        %v593 = vsel %vm537, %v587, %v568
        %v595 = vunpack.c.l.s4 1983009808
        %v596 = vunpack.c.0.s8 %v595
        %v597 = vperm.slane %v593, %v596
        %v598 = vrot.slane %v588, 4
        %v599 = vsel %vm537, %v598, %v586
        %v601 = vunpack.c.l.s4 1983009808
        %v602 = vunpack.c.0.s8 %v601
        %v603 = vperm.slane %v599, %v602
        %v604 = vsel %vm537, %v591, %v580
        %v606 = vunpack.c.l.s4 1983009808
        %v607 = vunpack.c.0.s8 %v606
        %v608 = vperm.slane %v604, %v607
        %v609 = vrot.slane %v592, 4
        %v610 = vsel %vm537, %v609, %v590
        %v612 = vunpack.c.l.s4 1983009808
        %v613 = vunpack.c.0.s8 %v612
        %v614 = vperm.slane %v610, %v613
        %v615 = vrot.slane %v603, 4
        %v616 = vsel %vm537, %v615, %v597
        %v617 = vrot.slane %v597, 4
        %v618 = vsel %vm537, %v603, %v617
        %v620 = vunpack.c.l.s4 1934713408
        %v621 = vunpack.c.0.s8 %v620
        %v622 = vperm.slane %v616, %v621
        %v624 = vunpack.c.l.s4 1934713408
        %v625 = vunpack.c.0.s8 %v624
        %v626 = vperm.slane %v618, %v625
        %v627 = vrot.slane %v614, 4
        %v628 = vsel %vm537, %v627, %v608
        %v629 = vrot.slane %v608, 4
        %v630 = vsel %vm537, %v614, %v629
        %v632 = vunpack.c.l.s4 1934713408
        %v633 = vunpack.c.0.s8 %v632
        %v634 = vperm.slane %v628, %v633
        %v636 = vunpack.c.l.s4 1934713408
        %v637 = vunpack.c.0.s8 %v636
        %v638 = vperm.slane %v630, %v637
        %v639 = vrot.slane %v634, 4
        %v640 = vsel %vm537, %v639, %v622
        %v641 = vrot.slane %v622, 4
        %v642 = vsel %vm537, %v634, %v641
        %v643 = vrot.slane %v638, 4
        %v644 = vsel %vm537, %v643, %v626
        %v645 = vrot.slane %v626, 4
        %v646 = vsel %vm537, %v638, %v645
        %648 = vrot.lane.b32.xlu0 %v461, 120
        %v649 = vpop.permute.xlu0 %648
        %651 = vrot.lane.b32.xlu0 %v461, 112
        %v652 = vpop.permute.xlu0 %651
        %654 = vrot.lane.b32.xlu0 %v461, 104
        %v655 = vpop.permute.xlu0 %654
        %v657 = vrot.slane %v652, 4
        %v658 = vsel %vm537, %v657, %v461
        %v659 = vrot.slane %v461, 4
        %v660 = vsel %vm537, %v652, %v659
        %v662 = vunpack.c.l.s4 1983009808
        %v663 = vunpack.c.0.s8 %v662
        %v664 = vperm.slane %v658, %v663
        %v666 = vunpack.c.l.s4 1983009808
        %v667 = vunpack.c.0.s8 %v666
        %v668 = vperm.slane %v660, %v667
        %v669 = vrot.slane %v655, 4
        %v670 = vsel %vm537, %v669, %v649
        %v671 = vrot.slane %v649, 4
        %v672 = vsel %vm537, %v655, %v671
        %v674 = vunpack.c.l.s4 1983009808
        %v675 = vunpack.c.0.s8 %v674
        %v676 = vperm.slane %v670, %v675
        %v678 = vunpack.c.l.s4 1983009808
        %v679 = vunpack.c.0.s8 %v678
        %v680 = vperm.slane %v672, %v679
        %v681 = vrot.slane %v676, 4
        %v682 = vsel %vm537, %v681, %v664
        %v683 = vrot.slane %v664, 4
        %v684 = vsel %vm537, %v676, %v683
        %v686 = vunpack.c.l.s4 1934713408
        %v687 = vunpack.c.0.s8 %v686
        %v688 = vperm.slane %v682, %v687
        %v690 = vunpack.c.l.s4 1934713408
        %v691 = vunpack.c.0.s8 %v690
        %v692 = vperm.slane %v684, %v691
        %v693 = vrot.slane %v680, 4
        %v694 = vsel %vm537, %v693, %v668
        %v695 = vrot.slane %v668, 4
        %v696 = vsel %vm537, %v680, %v695
        %v698 = vunpack.c.l.s4 1934713408
        %v699 = vunpack.c.0.s8 %v698
        %v700 = vperm.slane %v694, %v699
        %v702 = vunpack.c.l.s4 1934713408
        %v703 = vunpack.c.0.s8 %v702
        %v704 = vperm.slane %v696, %v703
        %v705 = vrot.slane %v688, 4
        %v706 = vsel %vm537, 0.0, %v705
        %v707 = vrot.slane %v692, 4
        %v708 = vsel %vm537, 0.0, %v707
        %v709 = vrot.slane %v700, 4
        %v710 = vsel %vm537, 0.0, %v709
        %v711 = vrot.slane %v704, 4
        %v712 = vsel %vm537, 0.0, %v711
        %v713 = vsel %vm537, %v707, %v688
        %v715 = vunpack.c.l.s4 1983009808
        %v716 = vunpack.c.0.s8 %v715
        %v717 = vperm.slane %v713, %v716
        %v718 = vrot.slane %v708, 4
        %v719 = vsel %vm537, %v718, %v706
        %v721 = vunpack.c.l.s4 1983009808
        %v722 = vunpack.c.0.s8 %v721
        %v723 = vperm.slane %v719, %v722
        %v724 = vsel %vm537, %v711, %v700
        %v726 = vunpack.c.l.s4 1983009808
        %v727 = vunpack.c.0.s8 %v726
        %v728 = vperm.slane %v724, %v727
        %v729 = vrot.slane %v712, 4
        %v730 = vsel %vm537, %v729, %v710
        %v732 = vunpack.c.l.s4 1983009808
        %v733 = vunpack.c.0.s8 %v732
        %v734 = vperm.slane %v730, %v733
        %v735 = vrot.slane %v723, 4
        %v736 = vsel %vm537, %v735, %v717
        %v737 = vrot.slane %v717, 4
        %v738 = vsel %vm537, %v723, %v737
        %v740 = vunpack.c.l.s4 1934713408
        %v741 = vunpack.c.0.s8 %v740
        %v742 = vperm.slane %v736, %v741
        %v744 = vunpack.c.l.s4 1934713408
        %v745 = vunpack.c.0.s8 %v744
        %v746 = vperm.slane %v738, %v745
        %v747 = vrot.slane %v734, 4
        %v748 = vsel %vm537, %v747, %v728
        %v749 = vrot.slane %v728, 4
        %v750 = vsel %vm537, %v734, %v749
        %v752 = vunpack.c.l.s4 1934713408
        %v753 = vunpack.c.0.s8 %v752
        %v754 = vperm.slane %v748, %v753
        %v756 = vunpack.c.l.s4 1934713408
        %v757 = vunpack.c.0.s8 %v756
        %v758 = vperm.slane %v750, %v757
        %v759 = vrot.slane %v754, 4
        %v760 = vsel %vm537, %v759, %v742
        %v761 = vrot.slane %v742, 4
        %v762 = vsel %vm537, %v754, %v761
        %v763 = vrot.slane %v758, 4
        %v764 = vsel %vm537, %v763, %v746
        %v765 = vrot.slane %v746, 4
        %v766 = vsel %vm537, %v758, %v765
        %768 = vrot.lane.b32.xlu0 %v489, 120
        %v769 = vpop.permute.xlu0 %768
        %771 = vrot.lane.b32.xlu0 %v489, 112
        %v772 = vpop.permute.xlu0 %771
        %774 = vrot.lane.b32.xlu0 %v489, 104
        %v775 = vpop.permute.xlu0 %774
        %v777 = vrot.slane %v772, 4
        %v778 = vsel %vm537, %v777, %v489
        %v779 = vrot.slane %v489, 4
        %v780 = vsel %vm537, %v772, %v779
        %v782 = vunpack.c.l.s4 1983009808
        %v783 = vunpack.c.0.s8 %v782
        %v784 = vperm.slane %v778, %v783
        %v786 = vunpack.c.l.s4 1983009808
        %v787 = vunpack.c.0.s8 %v786
        %v788 = vperm.slane %v780, %v787
        %v789 = vrot.slane %v775, 4
        %v790 = vsel %vm537, %v789, %v769
        %v791 = vrot.slane %v769, 4
        %v792 = vsel %vm537, %v775, %v791
        %v794 = vunpack.c.l.s4 1983009808
        %v795 = vunpack.c.0.s8 %v794
        %v796 = vperm.slane %v790, %v795
        %v798 = vunpack.c.l.s4 1983009808
        %v799 = vunpack.c.0.s8 %v798
        %v800 = vperm.slane %v792, %v799
        %v801 = vrot.slane %v796, 4
        %v802 = vsel %vm537, %v801, %v784
        %v803 = vrot.slane %v784, 4
        %v804 = vsel %vm537, %v796, %v803
        %v806 = vunpack.c.l.s4 1934713408
        %v807 = vunpack.c.0.s8 %v806
        %v808 = vperm.slane %v802, %v807
        %v810 = vunpack.c.l.s4 1934713408
        %v811 = vunpack.c.0.s8 %v810
        %v812 = vperm.slane %v804, %v811
        %v813 = vrot.slane %v800, 4
        %v814 = vsel %vm537, %v813, %v788
        %v815 = vrot.slane %v788, 4
        %v816 = vsel %vm537, %v800, %v815
        %v818 = vunpack.c.l.s4 1934713408
        %v819 = vunpack.c.0.s8 %v818
        %v820 = vperm.slane %v814, %v819
        %v822 = vunpack.c.l.s4 1934713408
        %v823 = vunpack.c.0.s8 %v822
        %v824 = vperm.slane %v816, %v823
        %v825 = vrot.slane %v808, 4
        %v826 = vsel %vm537, 0.0, %v825
        %v827 = vrot.slane %v812, 4
        %v828 = vsel %vm537, 0.0, %v827
        %v829 = vrot.slane %v820, 4
        %v830 = vsel %vm537, 0.0, %v829
        %v831 = vrot.slane %v824, 4
        %v832 = vsel %vm537, 0.0, %v831
        %v833 = vsel %vm537, %v827, %v808
        %v835 = vunpack.c.l.s4 1983009808
        %v836 = vunpack.c.0.s8 %v835
        %v837 = vperm.slane %v833, %v836
        %v838 = vrot.slane %v828, 4
        %v839 = vsel %vm537, %v838, %v826
        %v841 = vunpack.c.l.s4 1983009808
        %v842 = vunpack.c.0.s8 %v841
        %v843 = vperm.slane %v839, %v842
        %v844 = vsel %vm537, %v831, %v820
        %v846 = vunpack.c.l.s4 1983009808
        %v847 = vunpack.c.0.s8 %v846
        %v848 = vperm.slane %v844, %v847
        %v849 = vrot.slane %v832, 4
        %v850 = vsel %vm537, %v849, %v830
        %v852 = vunpack.c.l.s4 1983009808
        %v853 = vunpack.c.0.s8 %v852
        %v854 = vperm.slane %v850, %v853
        %v855 = vrot.slane %v843, 4
        %v856 = vsel %vm537, %v855, %v837
        %v857 = vrot.slane %v837, 4
        %v858 = vsel %vm537, %v843, %v857
        %v860 = vunpack.c.l.s4 1934713408
        %v861 = vunpack.c.0.s8 %v860
        %v862 = vperm.slane %v856, %v861
        %v864 = vunpack.c.l.s4 1934713408
        %v865 = vunpack.c.0.s8 %v864
        %v866 = vperm.slane %v858, %v865
        %v867 = vrot.slane %v854, 4
        %v868 = vsel %vm537, %v867, %v848
        %v869 = vrot.slane %v848, 4
        %v870 = vsel %vm537, %v854, %v869
        %v872 = vunpack.c.l.s4 1934713408
        %v873 = vunpack.c.0.s8 %v872
        %v874 = vperm.slane %v868, %v873
        %v876 = vunpack.c.l.s4 1934713408
        %v877 = vunpack.c.0.s8 %v876
        %v878 = vperm.slane %v870, %v877
        %v879 = vrot.slane %v874, 4
        %v880 = vsel %vm537, %v879, %v862
        %v881 = vrot.slane %v862, 4
        %v882 = vsel %vm537, %v874, %v881
        %v883 = vrot.slane %v878, 4
        %v884 = vsel %vm537, %v883, %v866
        %v885 = vrot.slane %v866, 4
        %v886 = vsel %vm537, %v878, %v885
        %vm887 = vcmask 64512
        %v889 = vsel %vm887, %v640, 0
        %v892 = vsel %vm887, %v760, 0
        %894 = vmatpush.xpose.msra.mxu0 0.0
        %895 = vmatpush.xpose.msra.mxu0 0.0
        %896 = vmatpush.xpose.msra.mxu0 0.0
        %897 = vmatpush.xpose.msra.mxu0 0.0
        %898 = vmatpush.xpose.msra.mxu0 0.0
        %899 = vmatpush.xpose.msra.mxu0 0.0
        %900 = vmatpush.xpose.msra.mxu0 0.0
        %901 = vmatpush.xpose.msra.mxu0 0.0
        %902 = vmatpush.xpose.msra.mxu0 0.0
        %903 = vmatpush.xpose.msra.mxu0 0.0
        %904 = vmatpush.xpose.msra.mxu0 0.0
        %905 = vmatpush.xpose.msra.mxu0 0.0
        %906 = vmatpush.xpose.msra.mxu0 0.0
        %907 = vmatpush.xpose.msra.mxu0 0.0
        %908 = vmatpush.xpose.msra.mxu0 0.0
        %909 = vmatpush.xpose.msra.mxu0 %v892
        %910 = vmatmul.f32.gmra.mxu0 %v889
        %v911 = vpop.f32.mrf.mxu0
        %v912 = vadd.f32 0.0, %v911
        %913 = vdwg.mxu0
        %v915 = vsel %vm887, %v642, 0
        %v918 = vsel %vm887, %v762, 0
        %920 = vmatpush.xpose.msra.mxu0 0.0
        %921 = vmatpush.xpose.msra.mxu0 0.0
        %922 = vmatpush.xpose.msra.mxu0 0.0
        %923 = vmatpush.xpose.msra.mxu0 0.0
        %924 = vmatpush.xpose.msra.mxu0 0.0
        %925 = vmatpush.xpose.msra.mxu0 0.0
        %926 = vmatpush.xpose.msra.mxu0 0.0
        %927 = vmatpush.xpose.msra.mxu0 0.0
        %928 = vmatpush.xpose.msra.mxu0 0.0
        %929 = vmatpush.xpose.msra.mxu0 0.0
        %930 = vmatpush.xpose.msra.mxu0 0.0
        %931 = vmatpush.xpose.msra.mxu0 0.0
        %932 = vmatpush.xpose.msra.mxu0 0.0
        %933 = vmatpush.xpose.msra.mxu0 0.0
        %934 = vmatpush.xpose.msra.mxu0 0.0
        %935 = vmatpush.xpose.msra.mxu0 %v918
        %936 = vmatmul.f32.gmra.mxu0 %v915
        %v937 = vpop.f32.mrf.mxu0
        %v938 = vadd.f32 0.0, %v937
        %939 = vdwg.mxu0
        %v941 = vsel %vm887, %v644, 0
        %v944 = vsel %vm887, %v764, 0
        %946 = vmatpush.xpose.msra.mxu0 0.0
        %947 = vmatpush.xpose.msra.mxu0 0.0
        %948 = vmatpush.xpose.msra.mxu0 0.0
        %949 = vmatpush.xpose.msra.mxu0 0.0
        %950 = vmatpush.xpose.msra.mxu0 0.0
        %951 = vmatpush.xpose.msra.mxu0 0.0
        %952 = vmatpush.xpose.msra.mxu0 0.0
        %953 = vmatpush.xpose.msra.mxu0 0.0
        %954 = vmatpush.xpose.msra.mxu0 0.0
        %955 = vmatpush.xpose.msra.mxu0 0.0
        %956 = vmatpush.xpose.msra.mxu0 0.0
        %957 = vmatpush.xpose.msra.mxu0 0.0
        %958 = vmatpush.xpose.msra.mxu0 0.0
        %959 = vmatpush.xpose.msra.mxu0 0.0
        %960 = vmatpush.xpose.msra.mxu0 0.0
        %961 = vmatpush.xpose.msra.mxu0 %v944
        %962 = vmatmul.f32.gmra.mxu0 %v941
        %v963 = vpop.f32.mrf.mxu0
        %v964 = vadd.f32 0.0, %v963
        %965 = vdwg.mxu0
        %v967 = vsel %vm887, %v646, 0
        %v970 = vsel %vm887, %v766, 0
        %972 = vmatpush.xpose.msra.mxu0 0.0
        %973 = vmatpush.xpose.msra.mxu0 0.0
        %974 = vmatpush.xpose.msra.mxu0 0.0
        %975 = vmatpush.xpose.msra.mxu0 0.0
        %976 = vmatpush.xpose.msra.mxu0 0.0
        %977 = vmatpush.xpose.msra.mxu0 0.0
        %978 = vmatpush.xpose.msra.mxu0 0.0
        %979 = vmatpush.xpose.msra.mxu0 0.0
        %980 = vmatpush.xpose.msra.mxu0 0.0
        %981 = vmatpush.xpose.msra.mxu0 0.0
        %982 = vmatpush.xpose.msra.mxu0 0.0
        %983 = vmatpush.xpose.msra.mxu0 0.0
        %984 = vmatpush.xpose.msra.mxu0 0.0
        %985 = vmatpush.xpose.msra.mxu0 0.0
        %986 = vmatpush.xpose.msra.mxu0 0.0
        %987 = vmatpush.xpose.msra.mxu0 %v970
        %988 = vmatmul.f32.gmra.mxu0 %v967
        %v989 = vpop.f32.mrf.mxu0
        %v990 = vadd.f32 0.0, %v989
        %991 = vdwg.mxu0
        %v992 = vsel %vm887, %v912, -inf
        %993 = vmax.xlane.f32.xlu0 %v992
        %v994 = vpop.xlane.xlu0 %993
        %v995 = vsel %vm887, %v938, -inf
        %996 = vmax.xlane.f32.xlu0 %v995
        %v997 = vpop.xlane.xlu0 %996
        %v998 = vsel %vm887, %v964, -inf
        %999 = vmax.xlane.f32.xlu0 %v998
        %v1000 = vpop.xlane.xlu0 %999
        %v1001 = vsel %vm887, %v990, -inf
        %1002 = vmax.xlane.f32.xlu0 %v1001
        %v1003 = vpop.xlane.xlu0 %1002
        %v1004 = vsub.f32 %v912, %v994
        %v1005 = vsub.f32 %v938, %v997
        %v1006 = vsub.f32 %v964, %v1000
        %v1007 = vsub.f32 %v990, %v1003
        %v1008 = vmul.f32 %v1004, 1.442695
        %v1009 = vpow.pop %v1008
        %v1010 = vmul.f32 %v1005, 1.442695
        %v1011 = vpow.pop %v1010
        %v1012 = vmul.f32 %v1006, 1.442695
        %v1013 = vpow.pop %v1012
        %v1014 = vmul.f32 %v1007, 1.442695
        %v1015 = vpow.pop %v1014
        %v1016 = vsel %vm887, %v1009, 0.0
        %1017 = vadd.xlane.f32.xlu0 %v1016
        %v1018 = vpop.xlane.xlu0 %1017
        %v1019 = vsel %vm887, %v1011, 0.0
        %1020 = vadd.xlane.f32.xlu0 %v1019
        %v1021 = vpop.xlane.xlu0 %1020
        %v1022 = vsel %vm887, %v1013, 0.0
        %1023 = vadd.xlane.f32.xlu0 %v1022
        %v1024 = vpop.xlane.xlu0 %1023
        %v1025 = vsel %vm887, %v1015, 0.0
        %1026 = vadd.xlane.f32.xlu0 %v1025
        %v1027 = vpop.xlane.xlu0 %1026
        %v1029 = vsel %vm887, %v1009, 0
        %1031 = vmatpush.msra.mxu0 0.0
        %1032 = vmatpush.msra.mxu0 0.0
        %1033 = vmatpush.msra.mxu0 0.0
        %1034 = vmatpush.msra.mxu0 0.0
        %1035 = vmatpush.msra.mxu0 0.0
        %1036 = vmatpush.msra.mxu0 0.0
        %1037 = vmatpush.msra.mxu0 0.0
        %1038 = vmatpush.msra.mxu0 0.0
        %1039 = vmatpush.msra.mxu0 0.0
        %1040 = vmatpush.msra.mxu0 0.0
        %1041 = vmatpush.msra.mxu0 0.0
        %1042 = vmatpush.msra.mxu0 0.0
        %1043 = vmatpush.msra.mxu0 0.0
        %1044 = vmatpush.msra.mxu0 0.0
        %1045 = vmatpush.msra.mxu0 0.0
        %1046 = vmatpush.msra.mxu0 %v880
        %1047 = vmatmul.f32.gmra.mxu0 %v1029
        %v1048 = vpop.f32.mrf.mxu0
        %v1049 = vadd.f32 0.0, %v1048
        %1050 = vdwg.mxu0
        %v1052 = vsel %vm887, %v1011, 0
        %1054 = vmatpush.msra.mxu0 0.0
        %1055 = vmatpush.msra.mxu0 0.0
        %1056 = vmatpush.msra.mxu0 0.0
        %1057 = vmatpush.msra.mxu0 0.0
        %1058 = vmatpush.msra.mxu0 0.0
        %1059 = vmatpush.msra.mxu0 0.0
        %1060 = vmatpush.msra.mxu0 0.0
        %1061 = vmatpush.msra.mxu0 0.0
        %1062 = vmatpush.msra.mxu0 0.0
        %1063 = vmatpush.msra.mxu0 0.0
        %1064 = vmatpush.msra.mxu0 0.0
        %1065 = vmatpush.msra.mxu0 0.0
        %1066 = vmatpush.msra.mxu0 0.0
        %1067 = vmatpush.msra.mxu0 0.0
        %1068 = vmatpush.msra.mxu0 0.0
        %1069 = vmatpush.msra.mxu0 %v882
        %1070 = vmatmul.f32.gmra.mxu0 %v1052
        %v1071 = vpop.f32.mrf.mxu0
        %v1072 = vadd.f32 0.0, %v1071
        %1073 = vdwg.mxu0
        %v1075 = vsel %vm887, %v1013, 0
        %1077 = vmatpush.msra.mxu0 0.0
        %1078 = vmatpush.msra.mxu0 0.0
        %1079 = vmatpush.msra.mxu0 0.0
        %1080 = vmatpush.msra.mxu0 0.0
        %1081 = vmatpush.msra.mxu0 0.0
        %1082 = vmatpush.msra.mxu0 0.0
        %1083 = vmatpush.msra.mxu0 0.0
        %1084 = vmatpush.msra.mxu0 0.0
        %1085 = vmatpush.msra.mxu0 0.0
        %1086 = vmatpush.msra.mxu0 0.0
        %1087 = vmatpush.msra.mxu0 0.0
        %1088 = vmatpush.msra.mxu0 0.0
        %1089 = vmatpush.msra.mxu0 0.0
        %1090 = vmatpush.msra.mxu0 0.0
        %1091 = vmatpush.msra.mxu0 0.0
        %1092 = vmatpush.msra.mxu0 %v884
        %1093 = vmatmul.f32.gmra.mxu0 %v1075
        %v1094 = vpop.f32.mrf.mxu0
        %v1095 = vadd.f32 0.0, %v1094
        %1096 = vdwg.mxu0
        %v1098 = vsel %vm887, %v1015, 0
        %1100 = vmatpush.msra.mxu0 0.0
        %1101 = vmatpush.msra.mxu0 0.0
        %1102 = vmatpush.msra.mxu0 0.0
        %1103 = vmatpush.msra.mxu0 0.0
        %1104 = vmatpush.msra.mxu0 0.0
        %1105 = vmatpush.msra.mxu0 0.0
        %1106 = vmatpush.msra.mxu0 0.0
        %1107 = vmatpush.msra.mxu0 0.0
        %1108 = vmatpush.msra.mxu0 0.0
        %1109 = vmatpush.msra.mxu0 0.0
        %1110 = vmatpush.msra.mxu0 0.0
        %1111 = vmatpush.msra.mxu0 0.0
        %1112 = vmatpush.msra.mxu0 0.0
        %1113 = vmatpush.msra.mxu0 0.0
        %1114 = vmatpush.msra.mxu0 0.0
        %1115 = vmatpush.msra.mxu0 %v886
        %1116 = vmatmul.f32.gmra.mxu0 %v1098
        %v1117 = vpop.f32.mrf.mxu0
        %v1118 = vadd.f32 0.0, %v1117
        %1119 = vdwg.mxu0
        %v1120 = vrcp.pop %v1018
        %v1121 = vmul.f32 %v1018, %v1120
        %v1122 = vsub.f32 1.0, %v1121
        %v1123 = vmul.f32 %v1120, %v1122
        %v1124 = vadd.f32 %v1120, %v1123
        %vm1125 = vweird.f32 %v1018
        %vm1126 = vweird.f32 %v1120
        %vm1127 = vmor %vm1125, %vm1126
        %v1128 = vsel %vm1127, %v1120, %v1124
        %v1129 = vand.u32 2147483647, %v1018
        %vm1130 = vcmp.eq.f32.partialorder %v1129, 8.507059e+37
        %v1131 = vand.u32 %v1018, 2147483648
        %v1132 = vor.u32 1.1754944e-38, %v1131
        %v1133 = vsel %vm1130, %v1132, %v1128
        %v1134 = vrcp.pop %v1021
        %v1135 = vmul.f32 %v1021, %v1134
        %v1136 = vsub.f32 1.0, %v1135
        %v1137 = vmul.f32 %v1134, %v1136
        %v1138 = vadd.f32 %v1134, %v1137
        %vm1139 = vweird.f32 %v1021
        %vm1140 = vweird.f32 %v1134
        %vm1141 = vmor %vm1139, %vm1140
        %v1142 = vsel %vm1141, %v1134, %v1138
        %v1143 = vand.u32 2147483647, %v1021
        %vm1144 = vcmp.eq.f32.partialorder %v1143, 8.507059e+37
        %v1145 = vand.u32 %v1021, 2147483648
        %v1146 = vor.u32 1.1754944e-38, %v1145
        %v1147 = vsel %vm1144, %v1146, %v1142
        %v1148 = vrcp.pop %v1024
        %v1149 = vmul.f32 %v1024, %v1148
        %v1150 = vsub.f32 1.0, %v1149
        %v1151 = vmul.f32 %v1148, %v1150
        %v1152 = vadd.f32 %v1148, %v1151
        %vm1153 = vweird.f32 %v1024
        %vm1154 = vweird.f32 %v1148
        %vm1155 = vmor %vm1153, %vm1154
        %v1156 = vsel %vm1155, %v1148, %v1152
        %v1157 = vand.u32 2147483647, %v1024
        %vm1158 = vcmp.eq.f32.partialorder %v1157, 8.507059e+37
        %v1159 = vand.u32 %v1024, 2147483648
        %v1160 = vor.u32 1.1754944e-38, %v1159
        %v1161 = vsel %vm1158, %v1160, %v1156
        %v1162 = vrcp.pop %v1027
        %v1163 = vmul.f32 %v1027, %v1162
        %v1164 = vsub.f32 1.0, %v1163
        %v1165 = vmul.f32 %v1162, %v1164
        %v1166 = vadd.f32 %v1162, %v1165
        %vm1167 = vweird.f32 %v1027
        %vm1168 = vweird.f32 %v1162
        %vm1169 = vmor %vm1167, %vm1168
        %v1170 = vsel %vm1169, %v1162, %v1166
        %v1171 = vand.u32 2147483647, %v1027
        %vm1172 = vcmp.eq.f32.partialorder %v1171, 8.507059e+37
        %v1173 = vand.u32 %v1027, 2147483648
        %v1174 = vor.u32 1.1754944e-38, %v1173
        %v1175 = vsel %vm1172, %v1174, %v1170
        %v1176 = vmul.f32 %v1049, %v1133
        %v1177 = vmul.f32 %v1072, %v1147
        %v1178 = vmul.f32 %v1095, %v1161
        %v1179 = vmul.f32 %v1118, %v1175
        %v1180 = vrot.slane %v1178, 4
        %v1181 = vsel %vm537, %v1180, %v1176
        %v1182 = vrot.slane %v1176, 4
        %v1183 = vsel %vm537, %v1178, %v1182
        %v1185 = vunpack.c.l.s4 1983009808
        %v1186 = vunpack.c.0.s8 %v1185
        %v1187 = vperm.slane %v1181, %v1186
        %v1189 = vunpack.c.l.s4 1983009808
        %v1190 = vunpack.c.0.s8 %v1189
        %v1191 = vperm.slane %v1183, %v1190
        %v1192 = vrot.slane %v1179, 4
        %v1193 = vsel %vm537, %v1192, %v1177
        %v1194 = vrot.slane %v1177, 4
        %v1195 = vsel %vm537, %v1179, %v1194
        %v1197 = vunpack.c.l.s4 1983009808
        %v1198 = vunpack.c.0.s8 %v1197
        %v1199 = vperm.slane %v1193, %v1198
        %v1201 = vunpack.c.l.s4 1983009808
        %v1202 = vunpack.c.0.s8 %v1201
        %v1203 = vperm.slane %v1195, %v1202
        %v1204 = vrot.slane %v1199, 4
        %v1205 = vsel %vm537, %v1204, %v1187
        %v1206 = vrot.slane %v1187, 4
        %v1207 = vsel %vm537, %v1199, %v1206
        %v1209 = vunpack.c.l.s4 1934713408
        %v1210 = vunpack.c.0.s8 %v1209
        %v1211 = vperm.slane %v1205, %v1210
        %v1213 = vunpack.c.l.s4 1934713408
        %v1214 = vunpack.c.0.s8 %v1213
        %v1215 = vperm.slane %v1207, %v1214
        %v1216 = vrot.slane %v1203, 4
        %v1217 = vsel %vm537, %v1216, %v1191
        %v1218 = vrot.slane %v1191, 4
        %v1219 = vsel %vm537, %v1203, %v1218
        %v1221 = vunpack.c.l.s4 1934713408
        %v1222 = vunpack.c.0.s8 %v1221
        %v1223 = vperm.slane %v1217, %v1222
        %v1225 = vunpack.c.l.s4 1934713408
        %v1226 = vunpack.c.0.s8 %v1225
        %v1227 = vperm.slane %v1219, %v1226
        %v1228 = vrot.slane %v1211, 4
        %v1229 = vsel %vm537, 0.0, %v1228
        %v1230 = vrot.slane %v1215, 4
        %v1231 = vsel %vm537, 0.0, %v1230
        %v1232 = vrot.slane %v1223, 4
        %v1233 = vsel %vm537, 0.0, %v1232
        %v1234 = vrot.slane %v1227, 4
        %v1235 = vsel %vm537, 0.0, %v1234
        %v1236 = vsel %vm537, %v1230, %v1211
        %v1238 = vunpack.c.l.s4 1983009808
        %v1239 = vunpack.c.0.s8 %v1238
        %v1240 = vperm.slane %v1236, %v1239
        %v1241 = vrot.slane %v1231, 4
        %v1242 = vsel %vm537, %v1241, %v1229
        %v1244 = vunpack.c.l.s4 1983009808
        %v1245 = vunpack.c.0.s8 %v1244
        %v1246 = vperm.slane %v1242, %v1245
        %v1247 = vsel %vm537, %v1234, %v1223
        %v1249 = vunpack.c.l.s4 1983009808
        %v1250 = vunpack.c.0.s8 %v1249
        %v1251 = vperm.slane %v1247, %v1250
        %v1252 = vrot.slane %v1235, 4
        %v1253 = vsel %vm537, %v1252, %v1233
        %v1255 = vunpack.c.l.s4 1983009808
        %v1256 = vunpack.c.0.s8 %v1255
        %v1257 = vperm.slane %v1253, %v1256
        %v1258 = vrot.slane %v1246, 4
        %v1259 = vsel %vm537, %v1258, %v1240
        %v1260 = vrot.slane %v1240, 4
        %v1261 = vsel %vm537, %v1246, %v1260
        %v1263 = vunpack.c.l.s4 1934713408
        %v1264 = vunpack.c.0.s8 %v1263
        %v1265 = vperm.slane %v1259, %v1264
        %v1267 = vunpack.c.l.s4 1934713408
        %v1268 = vunpack.c.0.s8 %v1267
        %v1269 = vperm.slane %v1261, %v1268
        %v1270 = vrot.slane %v1257, 4
        %v1271 = vsel %vm537, %v1270, %v1251
        %v1272 = vrot.slane %v1251, 4
        %v1273 = vsel %vm537, %v1257, %v1272
        %v1275 = vunpack.c.l.s4 1934713408
        %v1276 = vunpack.c.0.s8 %v1275
        %v1277 = vperm.slane %v1271, %v1276
        %v1279 = vunpack.c.l.s4 1934713408
        %v1280 = vunpack.c.0.s8 %v1279
        %v1281 = vperm.slane %v1273, %v1280
        %v1282 = vrot.slane %v1277, 4
        %v1283 = vsel %vm537, %v1282, %v1265
        %v1284 = vrot.slane %v1265, 4
        %v1285 = vsel %vm537, %v1277, %v1284
        %v1286 = vrot.slane %v1281, 4
        %v1287 = vsel %vm537, %v1286, %v1269
        %v1288 = vrot.slane %v1269, 4
        %v1289 = vsel %vm537, %v1281, %v1288
        %1291 = vrot.lane.b32.xlu0 %v1285, 8
        %v1292 = vpop.permute.xlu0 %1291
        %1295 = vrot.lane.b32.xlu0 %v1287, 16
        %v1296 = vpop.permute.xlu0 %1295
        %1299 = vrot.lane.b32.xlu0 %v1289, 24
        %v1300 = vpop.permute.xlu0 %1299
        %v1302 = vsel %vm887, %v1283, %v1292
        %vm1303 = vcmask 130048
        %v1304 = vsel %vm1303, %v1302, %v1296
        %vm1305 = vcmask 195584
        %v1306 = vsel %vm1305, %v1304, %v1300
        %v1307 = vld [vmem:[#allocation10] sm:$0xff]
        %v1308 = vld [vmem:[#allocation10 + $0x8] sm:$0xff]
        %v1309 = vld [vmem:[#allocation10 + $0x10] sm:$0xff]
        %v1310 = vld [vmem:[#allocation10 + $0x18] sm:$0xff]
        %v1311 = vld [vmem:[%s8] sm:$0x1]
        %v1313 = vperm.slane %v1311, 0
        %v1316 = vsel %vm439, %v1306, 0
        %1318 = vmatpush.msra.mxu0 0.0
        %1319 = vmatpush.msra.mxu0 0.0
        %1320 = vmatpush.msra.mxu0 0.0
        %1321 = vmatpush.msra.mxu0 0.0
        %1322 = vmatpush.msra.mxu0 0.0
        %1323 = vmatpush.msra.mxu0 0.0
        %1324 = vmatpush.msra.mxu0 0.0
        %1325 = vmatpush.msra.mxu0 0.0
        %1326 = vmatpush.msra.mxu0 0.0
        %1327 = vmatpush.msra.mxu0 0.0
        %1328 = vmatpush.msra.mxu0 0.0
        %1329 = vmatpush.msra.mxu0 0.0
        %1330 = vmatpush.msra.mxu0 %v1310
        %1331 = vmatpush.msra.mxu0 %v1309
        %1332 = vmatpush.msra.mxu0 %v1308
        %1333 = vmatpush.msra.mxu0 %v1307
        %1334 = vmatmul.f32.gmra.mxu0 %v1316
        %v1335 = vpop.f32.mrf.mxu0
        %v1336 = vadd.f32 %v1313, %v1335
        %1337 = vdwg.mxu0
        %1338 = vst.msk [vmem:[%s429] sm:$0xff] %vm439, %v1336
        %s1339 = sand.u32 %s244, 1
        %s1340 = scalar_lea.sflag [#allocation4], %s1339
        %s1341 = sand.u32 %s244, 1
        %s1342 = smul.addr %s1341, 8
        %s1343 = scalar_lea.vmem [#allocation11], %s1342
        // Predicated region
        $region77: #{tpu_custom_call.1} parent=55 // pred_check
          %p1344 = pneg %p254
        $region78: #{tpu_custom_call.1} parent=55 // pred_check_branch
          %1346 = sbr.rel (%p1344) target = $region80
        $region79: #{tpu_custom_call.1} parent=55 // pred_region
          %1348 = vsyncadd %s1340, 0
          %s1349 = sadd.s32 %s33, %s32
          %s1350 = smul.addr %s1349, 8
          %s1351 = scalar_lea.hbm %s9, %s1350
          %s1353 = sshll.u32 %s1343, 4
          %s1354 = int_to_ptr.vmem [resolvable:$true] %s1353
          %s1355 = sshll.u32 %s1351, 4
          %s1356 = int_to_ptr.hbm [resolvable:$true] %s1355
          %1358 = dma.vmem_to_hbm [thread:$0]  %s1354, 128, %s1356, %s1340
        $region80: #{tpu_custom_call.1} parent=55 // pred_fallthru
          _
      $region56: #{tpu_custom_call.1} parent=5 // pred_fallthru
        _
      %p1359 = scmp.le.s32.totalorder 2, %s23
      // Predicated region
      $region81: #{tpu_custom_call.1} parent=5 // pred_check
        %p1360 = pneg %p1359
      $region82: #{tpu_custom_call.1} parent=5 // pred_check_branch
        %1362 = sbr.rel (%p1360) target = $region84
      $region83: #{tpu_custom_call.1} parent=5 // pred_region
        %s1363 = ssub.s32 %s23, 2
        // Predicated region
        $region85: #{tpu_custom_call.1} parent=83 // pred_check
          %p1364 = pneg %p260
        $region86: #{tpu_custom_call.1} parent=83 // pred_check_branch
          %1366 = sbr.rel (%p1364) target = $region88
        $region87: #{tpu_custom_call.1} parent=83 // pred_region
          %s1367 = sand.u32 %s245, 1
          %s1368 = scalar_lea.sflag [#allocation4], %s1367
          %s1369 = sand.u32 %s245, 1
          %s1370 = smul.addr %s1369, 8
          %s1371 = scalar_lea.vmem [#allocation11], %s1370
          %1373 = dma.done %s1368, 128
        $region88: #{tpu_custom_call.1} parent=83 // pred_fallthru
          _
      $region84: #{tpu_custom_call.1} parent=5 // pred_fallthru
        _
    $region6: #{tpu_custom_call.1} parent=1 // loop_footer
      %s27 = sadd.s32 1, %s23
    $region7: #{tpu_custom_call.1} parent=1 // loop_footer_branch
      %22 = sbr.rel target = $region3
    $region8: #{tpu_custom_call.1} parent=1 // loop_exit
      _
    %1374 = vsyncpa [#allocation3], 1
    %s1375 = scalar_lea.sflag [#allocation3], 1
    %1376 = vsyncpa %s1375, 1
    %1377 = vsyncpa [#allocation6], 1
    %1378 = vsyncpa [#allocation9], 1
    %1379 = vsyncpa [#allocation4], 1
    %s1380 = scalar_lea.sflag [#allocation4], 1
    %1381 = vsyncpa %s1380, 1

</llo_original>
